<compile_context>
chip_gen: v7x
topology: tpu7x:2x2x1
jax: 0.10.0
libtpu: 0.0.40
codegen_flags: <defaults>
</compile_context>

<pallas_src>
import jax
import jax.numpy as jnp
import numpy as np
from jax.experimental import pallas as pl
from jax.experimental.pallas import tpu as pltpu


def _round_up(x, m):
    return ((x + m - 1) // m) * m


def _choose_vocab_tile(Hp, V):
    """Pick a lane-dense vocab tile.  Whole vocab as one block when the bf16
    weight slab is small; otherwise the largest 128-multiple tile (<=2048)
    whose padding waste stays below ~25% and whose double-buffered weight
    stream fits a conservative VMEM budget."""
    v128 = _round_up(V, 128)
    if Hp * v128 * 2 <= 4 * 1024 * 1024:          # whole-vocab single block
        return v128, v128
    for tn in (2048, 1024, 512, 256, 128):
        waste_ok = _round_up(V, tn) - v128 <= max(v128 // 4, 128)
        fits = 2 * Hp * tn * 2 <= 16 * 1024 * 1024
        if waste_ok and fits:
            return tn, _round_up(V, tn)
    return 128, v128


# ----------------------------- kernel 1: GRU cell -----------------------------
def _gru_kernel(enc_ref, h_prev_ref,
                w_i_rz_ref, w_h_rz_ref, b_rz_ref,
                w_in_ref, w_hn_ref, b_in_ref, b_hn_ref,
                h_new_ref, h_bf_ref):
    """One GRUCell step.  No grid: everything is resident in VMEM once."""
    Hp = h_prev_ref.shape[1]
    h_prev = h_prev_ref[...]                       # (Bp, Hp) f32
    enc = enc_ref[...]                             # (Bp, Hp) bf16
    h_bf = h_prev.astype(jnp.bfloat16)

    # r/z gates: two accumulating matmuls (no lane-dim concat of activations).
    g_rz = (jnp.dot(enc, w_i_rz_ref[...], preferred_element_type=jnp.float32)
            + jnp.dot(h_bf, w_h_rz_ref[...], preferred_element_type=jnp.float32)
            + b_rz_ref[...])                       # (Bp, 2Hp) f32
    r = jax.nn.sigmoid(g_rz[:, :Hp])
    z = jax.nn.sigmoid(g_rz[:, Hp:])

    # n gate: the hidden contribution must be scaled by r before tanh.
    gi_n = jnp.dot(enc, w_in_ref[...], preferred_element_type=jnp.float32) + b_in_ref[...]
    gh_n = jnp.dot(h_bf, w_hn_ref[...], preferred_element_type=jnp.float32) + b_hn_ref[...]
    n = jnp.tanh(gi_n + r * gh_n)

    h_new = (1.0 - z) * n + z * h_prev             # f32
    h_new_ref[...] = h_new
    h_bf_ref[...] = h_new.astype(jnp.bfloat16)     # cached once for the projection


# ----------------------- kernel 2: output projection --------------------------
def _proj_kernel(h_ref, w_ref, b_ref, out_ref):
    """One lane-dense (Bp, tn) slice of logits = h_new @ W_out^T + b_out.
    Pure tiled matmul: every grid step is independent -> 'parallel' (v7x)."""
    out_ref[...] = (jnp.dot(h_ref[...], w_ref[...],
                            preferred_element_type=jnp.float32) + b_ref[...])


# ------------------------------- parameters -----------------------------------
def init_params(key, vocab_size, hidden_size):
    """Raw f32 params mirroring the PyTorch module's shapes/init."""
    k = jax.random.split(key, 7)
    bound = 1.0 / np.sqrt(hidden_size)
    return {
        "embedding": jax.random.normal(k[0], (vocab_size, hidden_size), jnp.float32),
        "w_ih": jax.random.uniform(k[1], (3 * hidden_size, hidden_size), jnp.float32, -bound, bound),
        "w_hh": jax.random.uniform(k[2], (3 * hidden_size, hidden_size), jnp.float32, -bound, bound),
        "b_ih": jax.random.uniform(k[3], (3 * hidden_size,), jnp.float32, -bound, bound),
        "b_hh": jax.random.uniform(k[4], (3 * hidden_size,), jnp.float32, -bound, bound),
        "w_out": jax.random.uniform(k[5], (vocab_size, hidden_size), jnp.float32, -bound, bound),
        "b_out": jax.random.uniform(k[6], (vocab_size,), jnp.float32, -bound, bound),
    }


def prepare_kernel_params(raw):
    """One-time: pad per-gate slabs to multiples of 128, fuse r/z along the
    OUTPUT axis (two (Hp, 2Hp) slabs), transpose to (in, out), cast matmul
    weights to bf16 (biases stay f32)."""
    emb, w_ih, w_hh = raw["embedding"], raw["w_ih"], raw["w_hh"]
    b_ih, b_hh, w_out, b_out = raw["b_ih"], raw["b_hh"], raw["w_out"], raw["b_out"]

    V, H = emb.shape
    Hp = _round_up(H, 128)
    tn, Vp = _choose_vocab_tile(Hp, V)

    def gate_slab(w, g):                    # torch (3H, H) layout, gate g in {r,z,n}
        wt = w[g * H:(g + 1) * H, :].T      # (H_in, H_out)
        return jnp.pad(wt, ((0, Hp - H), (0, Hp - H)))

    def gate_bias(b, g):
        return jnp.pad(b[g * H:(g + 1) * H], (0, Hp - H)).reshape(1, Hp)

    w_ir, w_iz, w_in_ = (gate_slab(w_ih, g) for g in range(3))
    w_hr, w_hz, w_hn_ = (gate_slab(w_hh, g) for g in range(3))

    bf = jnp.bfloat16
    # r/z weights fused along the output axis only, so the kernel uses two
    # accumulating matmuls instead of concatenating activations on the lane dim.
    w_i_rz = jnp.concatenate([w_ir, w_iz], axis=1)                  # (Hp, 2Hp)
    w_h_rz = jnp.concatenate([w_hr, w_hz], axis=1)                  # (Hp, 2Hp)
    b_rz = (jnp.concatenate([gate_bias(b_ih, 0), gate_bias(b_ih, 1)], axis=1)
            + jnp.concatenate([gate_bias(b_hh, 0), gate_bias(b_hh, 1)], axis=1))

    return {
        "V": V, "H": H, "Hp": Hp, "Vp": Vp, "tn": tn,
        "embedding": jnp.pad(emb, ((0, 0), (0, Hp - H))).astype(bf),        # (V, Hp)
        "w_i_rz": w_i_rz.astype(bf), "w_h_rz": w_h_rz.astype(bf),
        "b_rz": b_rz.astype(jnp.float32),
        "w_in": w_in_.astype(bf), "w_hn": w_hn_.astype(bf),
        "b_in": gate_bias(b_ih, 2), "b_hn": gate_bias(b_hh, 2),
        "w_out_T": jnp.pad(w_out.T, ((0, Hp - H), (0, Vp - V))).astype(bf),  # (Hp, Vp)
        "b_out": jnp.pad(b_out, (0, Vp - V)).reshape(1, Vp).astype(jnp.float32),
    }


# --------------------------------- forward ------------------------------------
def no_attention_decoder(x, h_prev, kp):
    """Pallas-backed forward. Returns (output (B,V), h_new (B,H), None)."""
    V, H, Hp, Vp, tn = kp["V"], kp["H"], kp["Hp"], kp["Vp"], kp["tn"]
    B = x.shape[0]
    Bp = _round_up(B, 16)            # bf16 packs 16 sublanes per vreg (v6e/v7x)

    # Embedding gather stays in the wrapper (cheap glue).  Padding the token
    # ids (not the gathered rows) means the gather emits the padded block
    # directly.  A real decode loop should carry the padded h state to avoid
    # the per-step jnp.pad below.
    tok = jnp.clip(x.reshape(B).astype(jnp.int32), 0, V - 1)
    tok = jnp.pad(tok, (0, Bp - B))
    encoded = jnp.take(kp["embedding"], tok, axis=0)                # (Bp, Hp) bf16
    h_prev_p = jnp.pad(h_prev.astype(jnp.float32), ((0, Bp - B), (0, Hp - H)))

    # --- kernel 1: GRU cell (no grid -> weights copied to VMEM once) ---------
    gru_vmem = 12 * Hp * Hp + 16 * Bp * Hp + (4 << 20)
    gru_vmem = int(min(max(gru_vmem, 16 << 20), 64 << 20))
    h_new_p, h_bf = pl.pallas_call(
        _gru_kernel,
        out_shape=(
            jax.ShapeDtypeStruct((Bp, Hp), jnp.float32),
            jax.ShapeDtypeStruct((Bp, Hp), jnp.bfloat16),
        ),
        # h_prev (input 1) aliases h_new f32 (output 0): no extra HBM buffer.
        input_output_aliases={1: 0},
        compiler_params=pltpu.CompilerParams(vmem_limit_bytes=gru_vmem),
    )(encoded, h_prev_p,
      kp["w_i_rz"], kp["w_h_rz"], kp["b_rz"],
      kp["w_in"], kp["w_hn"], kp["b_in"], kp["b_hn"])

    # --- kernel 2: output projection (vocab-tiled, megacore-parallel) --------
    n_tiles = Vp // tn
    proj_vmem = (2 * (Hp * tn * 2 + tn * 4)     # double-buffered w/b tiles
                 + 2 * Bp * tn * 4              # double-buffered logits tiles
                 + 2 * Bp * Hp * 2              # h (bf16)
                 + (4 << 20))                   # margin
    proj_vmem = int(min(max(proj_vmem, 16 << 20), 64 << 20))

    out_p = pl.pallas_call(
        _proj_kernel,
        out_shape=jax.ShapeDtypeStruct((Bp, Vp), jnp.float32),
        grid_spec=pltpu.PrefetchScalarGridSpec(
            num_scalar_prefetch=0,
            grid=(n_tiles,),
            in_specs=[
                pl.BlockSpec((Bp, Hp), lambda j: (0, 0)),      # h_new (bf16, tiny)
                pl.BlockSpec((Hp, tn), lambda j: (0, j)),      # w_out tile
                pl.BlockSpec((1, tn), lambda j: (0, j)),       # b_out tile
            ],
            out_specs=pl.BlockSpec((Bp, tn), lambda j: (0, j)),
        ),
        # Every vocab tile is independent: shardable across both v7x TCs.
        compiler_params=pltpu.CompilerParams(
            dimension_semantics=("parallel",),
            vmem_limit_bytes=proj_vmem),
    )(h_bf, kp["w_out_T"], kp["b_out"])

    return out_p[:B, :V], h_new_p[:B, :H], None


# -------------------------------- reference -----------------------------------
def _reference(x, h_prev, raw):
    """Pure-JAX reference (torch nn.GRUCell semantics). Weights are routed
    through bf16 so the only kernel/reference delta is activation rounding."""
    V, H = raw["embedding"].shape
    q = lambda name: raw[name].astype(jnp.bfloat16).astype(jnp.float32)
    emb, w_ih, w_hh, w_out = q("embedding"), q("w_ih"), q("w_hh"), q("w_out")
    b_ih, b_hh, b_out = raw["b_ih"], raw["b_hh"], raw["b_out"]

    tok = x.reshape(-1)
    enc = emb[tok]
    gi = enc @ w_ih.T + b_ih
    gh = h_prev @ w_hh.T + b_hh
    r = jax.nn.sigmoid(gi[:, :H] + gh[:, :H])
    z = jax.nn.sigmoid(gi[:, H:2 * H] + gh[:, H:2 * H])
    n = jnp.tanh(gi[:, 2 * H:] + r * gh[:, 2 * H:])
    h_new = (1.0 - z) * n + z * h_prev
    out = h_new @ w_out.T + b_out
    return out, h_new


if __name__ == "__main__":
    batch = 2
    vocab_size = 16
    hidden_size = 32

    key = jax.random.PRNGKey(0)
    k_params, k_x, k_h = jax.random.split(key, 3)

    raw = init_params(k_params, vocab_size, hidden_size)
    kparams = prepare_kernel_params(raw)

    x = jax.random.randint(k_x, (batch, 1), 0, vocab_size, dtype=jnp.int32)
    h_prev = jax.random.normal(k_h, (batch, hidden_size), jnp.float32)

    out, h_new, attn = no_attention_decoder(x, h_prev, kparams)
    out = jax.block_until_ready(out)
    h_new = jax.block_until_ready(h_new)

    ref_out, ref_h = _reference(x, h_prev, raw)
    np.testing.assert_allclose(np.asarray(out), np.asarray(ref_out),
                               rtol=2e-2, atol=2e-2)
    np.testing.assert_allclose(np.asarray(h_new), np.asarray(ref_h),
                               rtol=2e-2, atol=2e-2)
    assert out.shape == (batch, vocab_size)
    assert h_new.shape == (batch, hidden_size)
    assert attn is None

    print("KERNEL_OK")
</pallas_src>

<mosaic_0001>
module attributes {stable_mosaic.version = 11 : i64} {
  func.func @_gru_kernel(%arg0: memref<16x128xbf16, #tpu.memory_space<vmem>>, %arg1: memref<16x128xf32, #tpu.memory_space<vmem>>, %arg2: memref<128x256xbf16, #tpu.memory_space<vmem>>, %arg3: memref<128x256xbf16, #tpu.memory_space<vmem>>, %arg4: memref<1x256xf32, #tpu.memory_space<vmem>>, %arg5: memref<128x128xbf16, #tpu.memory_space<vmem>>, %arg6: memref<128x128xbf16, #tpu.memory_space<vmem>>, %arg7: memref<1x128xf32, #tpu.memory_space<vmem>>, %arg8: memref<1x128xf32, #tpu.memory_space<vmem>>, %arg9: memref<16x128xf32, #tpu.memory_space<vmem>>, %arg10: memref<16x128xbf16, #tpu.memory_space<vmem>>) attributes {dimension_semantics = [], scalar_prefetch = 0 : i64, scratch_operands = 0 : i64, tpu.core_type = #tpu.core_type<tc>} {
    %c0 = arith.constant 0 : index
    %c0_0 = arith.constant 0 : index
    %0 = vector.load %arg1[%c0, %c0_0] : memref<16x128xf32, #tpu.memory_space<vmem>>, vector<16x128xf32>
    %c0_1 = arith.constant 0 : index
    %c0_2 = arith.constant 0 : index
    %1 = vector.load %arg0[%c0_1, %c0_2] : memref<16x128xbf16, #tpu.memory_space<vmem>>, vector<16x128xbf16>
    %2 = arith.truncf %0 : vector<16x128xf32> to vector<16x128xbf16>
    %c0_3 = arith.constant 0 : index
    %c0_4 = arith.constant 0 : index
    %3 = vector.load %arg2[%c0_3, %c0_4] : memref<128x256xbf16, #tpu.memory_space<vmem>>, vector<128x256xbf16>
    %cst = arith.constant dense<0.000000e+00> : vector<16x256xf32>
    %4 = tpu.matmul %1, %3, %cst {dimension_numbers = #tpu.dot_dimension_numbers<[1], [0], [0], [1], [0, 0, 1, 1], [], []>} : vector<16x128xbf16>, vector<128x256xbf16>, vector<16x256xf32> -> vector<16x256xf32>
    %c0_5 = arith.constant 0 : index
    %c0_6 = arith.constant 0 : index
    %5 = vector.load %arg3[%c0_5, %c0_6] : memref<128x256xbf16, #tpu.memory_space<vmem>>, vector<128x256xbf16>
    %cst_7 = arith.constant dense<0.000000e+00> : vector<16x256xf32>
    %6 = tpu.matmul %2, %5, %cst_7 {dimension_numbers = #tpu.dot_dimension_numbers<[1], [0], [0], [1], [0, 0, 1, 1], [], []>} : vector<16x128xbf16>, vector<128x256xbf16>, vector<16x256xf32> -> vector<16x256xf32>
    %7 = arith.addf %4, %6 : vector<16x256xf32>
    %c0_8 = arith.constant 0 : index
    %c0_9 = arith.constant 0 : index
    %8 = vector.load %arg4[%c0_8, %c0_9] : memref<1x256xf32, #tpu.memory_space<vmem>>, vector<1x256xf32>
    %9 = vector.broadcast %8 : vector<1x256xf32> to vector<16x256xf32>
    %10 = arith.addf %7, %9 : vector<16x256xf32>
    %11 = vector.extract_strided_slice %10 {offsets = [0, 0], sizes = [16, 128], strides = [1, 1]} : vector<16x256xf32> to vector<16x128xf32>
    %12 = arith.negf %11 : vector<16x128xf32>
    %13 = math.exp %12 : vector<16x128xf32>
    %cst_10 = arith.constant 1.000000e+00 : f32
    %14 = vector.broadcast %cst_10 : f32 to vector<16x128xf32>
    %15 = arith.addf %14, %13 : vector<16x128xf32>
    %16 = arith.divf %14, %15 : vector<16x128xf32>
    %17 = vector.extract_strided_slice %10 {offsets = [0, 128], sizes = [16, 128], strides = [1, 1]} : vector<16x256xf32> to vector<16x128xf32>
    %18 = arith.negf %17 : vector<16x128xf32>
    %19 = math.exp %18 : vector<16x128xf32>
    %cst_11 = arith.constant 1.000000e+00 : f32
    %20 = vector.broadcast %cst_11 : f32 to vector<16x128xf32>
    %21 = arith.addf %20, %19 : vector<16x128xf32>
    %22 = arith.divf %20, %21 : vector<16x128xf32>
    %c0_12 = arith.constant 0 : index
    %c0_13 = arith.constant 0 : index
    %23 = vector.load %arg5[%c0_12, %c0_13] : memref<128x128xbf16, #tpu.memory_space<vmem>>, vector<128x128xbf16>
    %cst_14 = arith.constant dense<0.000000e+00> : vector<16x128xf32>
    %24 = tpu.matmul %1, %23, %cst_14 {dimension_numbers = #tpu.dot_dimension_numbers<[1], [0], [0], [1], [0, 0, 1, 1], [], []>} : vector<16x128xbf16>, vector<128x128xbf16>, vector<16x128xf32> -> vector<16x128xf32>
    %c0_15 = arith.constant 0 : index
    %c0_16 = arith.constant 0 : index
    %25 = vector.load %arg7[%c0_15, %c0_16] : memref<1x128xf32, #tpu.memory_space<vmem>>, vector<1x128xf32>
    %26 = vector.broadcast %25 : vector<1x128xf32> to vector<16x128xf32>
    %27 = arith.addf %24, %26 : vector<16x128xf32>
    %c0_17 = arith.constant 0 : index
    %c0_18 = arith.constant 0 : index
    %28 = vector.load %arg6[%c0_17, %c0_18] : memref<128x128xbf16, #tpu.memory_space<vmem>>, vector<128x128xbf16>
    %cst_19 = arith.constant dense<0.000000e+00> : vector<16x128xf32>
    %29 = tpu.matmul %2, %28, %cst_19 {dimension_numbers = #tpu.dot_dimension_numbers<[1], [0], [0], [1], [0, 0, 1, 1], [], []>} : vector<16x128xbf16>, vector<128x128xbf16>, vector<16x128xf32> -> vector<16x128xf32>
    %c0_20 = arith.constant 0 : index
    %c0_21 = arith.constant 0 : index
    %30 = vector.load %arg8[%c0_20, %c0_21] : memref<1x128xf32, #tpu.memory_space<vmem>>, vector<1x128xf32>
    %31 = vector.broadcast %30 : vector<1x128xf32> to vector<16x128xf32>
    %32 = arith.addf %29, %31 : vector<16x128xf32>
    %33 = arith.mulf %16, %32 : vector<16x128xf32>
    %34 = arith.addf %27, %33 : vector<16x128xf32>
    %35 = math.tanh %34 : vector<16x128xf32>
    %cst_22 = arith.constant 1.000000e+00 : f32
    %36 = vector.broadcast %cst_22 : f32 to vector<16x128xf32>
    %37 = arith.subf %36, %22 : vector<16x128xf32>
    %38 = arith.mulf %37, %35 : vector<16x128xf32>
    %39 = arith.mulf %22, %0 : vector<16x128xf32>
    %40 = arith.addf %38, %39 : vector<16x128xf32>
    %c0_23 = arith.constant 0 : index
    %c0_24 = arith.constant 0 : index
    %41 = vector.load %arg9[%c0_23, %c0_24] : memref<16x128xf32, #tpu.memory_space<vmem>>, vector<16x128xf32>
    tpu.vector_store %arg9[%c0_23, %c0_24], %40 {strides = array<i32>} : memref<16x128xf32, #tpu.memory_space<vmem>>, vector<16x128xf32>,
    %42 = arith.truncf %40 : vector<16x128xf32> to vector<16x128xbf16>
    %c0_25 = arith.constant 0 : index
    %c0_26 = arith.constant 0 : index
    %43 = vector.load %arg10[%c0_25, %c0_26] : memref<16x128xbf16, #tpu.memory_space<vmem>>, vector<16x128xbf16>
    tpu.vector_store %arg10[%c0_25, %c0_26], %42 {strides = array<i32>} : memref<16x128xbf16, #tpu.memory_space<vmem>>, vector<16x128xbf16>,
    return
  }
}

</mosaic_0001>

<llo_original>
// kernel: tpu_custom_call.1
$region0: #{tpu_custom_call.1}
  #allocation0 [shape = 'u32[]', space=smem, size = 0x4, offset = 0x4, fixed_abs, tag = 'smem constant byte address 0x4 - core index']
  #allocation1 [shape = 'u32[144,128]{1,0:T(1,128)}', space=vmem, size = 0x12000, scoped, tag = 'internal scratch']
  %s0 = inlined_call_operand.vmem [shape: bf16[16,128], index: 0, kind: input, shape index: {}]
  %s1 = inlined_call_operand.hbm [shape: f32[16,128], index: 1, kind: input, shape index: {}, may-alias: {1,9}]
  %s2 = inlined_call_operand.hbm [shape: bf16[128,256], index: 2, kind: input, shape index: {}]
  %s3 = inlined_call_operand.hbm [shape: bf16[128,256], index: 3, kind: input, shape index: {}]
  %s4 = inlined_call_operand.vmem [shape: f32[1,256], index: 4, kind: input, shape index: {}]
  %s5 = inlined_call_operand.hbm [shape: bf16[128,128], index: 5, kind: input, shape index: {}]
  %s6 = inlined_call_operand.hbm [shape: bf16[128,128], index: 6, kind: input, shape index: {}]
  %s7 = inlined_call_operand.vmem [shape: f32[1,128], index: 7, kind: input, shape index: {}]
  %s8 = inlined_call_operand.vmem [shape: f32[1,128], index: 8, kind: input, shape index: {}]
  %s9 = inlined_call_operand.hbm [shape: f32[16,128], index: 9, kind: output, shape index: {0}, may-alias: {1,9}]
  %s10 = inlined_call_operand.hbm [shape: bf16[16,128], index: 10, kind: output, shape index: {1}]
  %11 = xla_tuple %s9, %s10
  %s12 = sld [smem:[#allocation0]]
  $region74: #{tpu_custom_call.1} parent=0
    _
  %s14 = ssub.s32 1, %s12
  %s15 = scalar_select 0, %s14, %s12
  $region1: #{tpu_custom_call.1} parent=0
    #allocation2 [shape = 'u8[8192]{0}', space=vmem, size = 0x2000, scoped, tag = 'input window, operand 1, single buffered']
    #allocation3 [shape = 's32[1]{0}', space=sflag, size = 0x4, scoped, tag = 'scoped memory for tpu_custom_call.1']
    #allocation4 [shape = 's32[1]{0}', space=sflag, size = 0x4, scoped, tag = 'scoped memory for tpu_custom_call.1']
    #allocation5 [shape = 'u8[65536]{0}', space=vmem, size = 0x10000, scoped, tag = 'input window, operand 2, single buffered']
    #allocation6 [shape = 's32[1]{0}', space=sflag, size = 0x4, scoped, tag = 'scoped memory for tpu_custom_call.1']
    #allocation7 [shape = 'u8[65536]{0}', space=vmem, size = 0x10000, scoped, tag = 'input window, operand 3, single buffered']
    #allocation8 [shape = 'u8[32768]{0}', space=vmem, size = 0x8000, scoped, tag = 'input window, operand 5, single buffered']
    #allocation9 [shape = 's32[1]{0}', space=sflag, size = 0x4, scoped, tag = 'scoped memory for tpu_custom_call.1']
    #allocation10 [shape = 'u8[32768]{0}', space=vmem, size = 0x8000, scoped, tag = 'input window, operand 6, single buffered']
    #allocation11 [shape = 'u8[8192]{0}', space=vmem, size = 0x2000, scoped, tag = 'output window, operand 0, single buffered']
    #allocation12 [shape = 'u8[4096]{0}', space=vmem, size = 0x1000, scoped, tag = 'output window, operand 1, single buffered']
    #allocation13 [shape = 's32[1]{0}', space=sflag, size = 0x4, scoped, tag = 'scoped memory for tpu_custom_call.1']
    %16 = vsyncpa [#allocation3], 0
    %17 = vsyncpa [#allocation6], 0
    %18 = vsyncpa [#allocation9], 0
    %19 = vsyncpa [#allocation4], 0
    %20 = vsyncpa [#allocation13], 0
    // Predicated region
    $region2: #{tpu_custom_call.1} parent=1 // pred_check
      _
    $region3: #{tpu_custom_call.1} parent=1 // pred_check_branch
      %22 = sbr.rel (0) target = $region5
    $region4: #{tpu_custom_call.1} parent=1 // pred_region
      _
    $region5: #{tpu_custom_call.1} parent=1 // pred_fallthru
      _
    // Predicated region
    $region6: #{tpu_custom_call.1} parent=1 // pred_check
      _
    $region7: #{tpu_custom_call.1} parent=1 // pred_check_branch
      %24 = sbr.rel (0) target = $region9
    $region8: #{tpu_custom_call.1} parent=1 // pred_region
      %s26 = ssub.s32 256, 256
      %27 = vsyncadd [#allocation3], %s26
      %s28 = sshll.u32 [#allocation2], 4
      %s29 = int_to_ptr.vmem [resolvable:$true] %s28
      %34 = dma.hbm_to_vmem [thread:$0]  %s1, 256, %s29, [#allocation3], 128, 128, 8
    $region9: #{tpu_custom_call.1} parent=1 // pred_fallthru
      _
    // Predicated region
    $region10: #{tpu_custom_call.1} parent=1 // pred_check
      _
    $region11: #{tpu_custom_call.1} parent=1 // pred_check_branch
      %36 = sbr.rel (0) target = $region13
    $region12: #{tpu_custom_call.1} parent=1 // pred_region
      %s38 = ssub.s32 2048, 2048
      %39 = vsyncadd [#allocation6], %s38
      %s40 = sshll.u32 [#allocation5], 4
      %s41 = int_to_ptr.vmem [resolvable:$true] %s40
      %46 = dma.hbm_to_vmem [thread:$0]  %s2, 2048, %s41, [#allocation6], 128, 128, 8
    $region13: #{tpu_custom_call.1} parent=1 // pred_fallthru
      _
    // Predicated region
    $region14: #{tpu_custom_call.1} parent=1 // pred_check
      _
    $region15: #{tpu_custom_call.1} parent=1 // pred_check_branch
      %48 = sbr.rel (0) target = $region17
    $region16: #{tpu_custom_call.1} parent=1 // pred_region
      %s50 = ssub.s32 2048, 2048
      %51 = vsyncadd [#allocation6], %s50
      %s52 = sshll.u32 [#allocation7], 4
      %s53 = int_to_ptr.vmem [resolvable:$true] %s52
      %58 = dma.hbm_to_vmem [thread:$0]  %s3, 2048, %s53, [#allocation6], 128, 128, 8
    $region17: #{tpu_custom_call.1} parent=1 // pred_fallthru
      _
    // Predicated region
    $region18: #{tpu_custom_call.1} parent=1 // pred_check
      _
    $region19: #{tpu_custom_call.1} parent=1 // pred_check_branch
      %60 = sbr.rel (0) target = $region21
    $region20: #{tpu_custom_call.1} parent=1 // pred_region
      _
    $region21: #{tpu_custom_call.1} parent=1 // pred_fallthru
      _
    // Predicated region
    $region22: #{tpu_custom_call.1} parent=1 // pred_check
      _
    $region23: #{tpu_custom_call.1} parent=1 // pred_check_branch
      %62 = sbr.rel (0) target = $region25
    $region24: #{tpu_custom_call.1} parent=1 // pred_region
      %s64 = ssub.s32 1024, 1024
      %65 = vsyncadd [#allocation9], %s64
      %s66 = sshll.u32 [#allocation8], 4
      %s67 = int_to_ptr.vmem [resolvable:$true] %s66
      %72 = dma.hbm_to_vmem [thread:$0]  %s5, 1024, %s67, [#allocation9], 64, 64, 4
    $region25: #{tpu_custom_call.1} parent=1 // pred_fallthru
      _
    // Predicated region
    $region26: #{tpu_custom_call.1} parent=1 // pred_check
      _
    $region27: #{tpu_custom_call.1} parent=1 // pred_check_branch
      %74 = sbr.rel (0) target = $region29
    $region28: #{tpu_custom_call.1} parent=1 // pred_region
      %s76 = ssub.s32 1024, 1024
      %77 = vsyncadd [#allocation9], %s76
      %s78 = sshll.u32 [#allocation10], 4
      %s79 = int_to_ptr.vmem [resolvable:$true] %s78
      %84 = dma.hbm_to_vmem [thread:$0]  %s6, 1024, %s79, [#allocation9], 64, 64, 4
    $region29: #{tpu_custom_call.1} parent=1 // pred_fallthru
      _
    // Predicated region
    $region30: #{tpu_custom_call.1} parent=1 // pred_check
      _
    $region31: #{tpu_custom_call.1} parent=1 // pred_check_branch
      %86 = sbr.rel (0) target = $region33
    $region32: #{tpu_custom_call.1} parent=1 // pred_region
      _
    $region33: #{tpu_custom_call.1} parent=1 // pred_fallthru
      _
    // Predicated region
    $region34: #{tpu_custom_call.1} parent=1 // pred_check
      _
    $region35: #{tpu_custom_call.1} parent=1 // pred_check_branch
      %88 = sbr.rel (0) target = $region37
    $region36: #{tpu_custom_call.1} parent=1 // pred_region
      _
    $region37: #{tpu_custom_call.1} parent=1 // pred_fallthru
      _
    // Predicated region
    $region38: #{tpu_custom_call.1} parent=1 // pred_check
      _
    $region39: #{tpu_custom_call.1} parent=1 // pred_check_branch
      %90 = sbr.rel (0) target = $region41
    $region40: #{tpu_custom_call.1} parent=1 // pred_region
      %91 = dma.done [#allocation3], 256
    $region41: #{tpu_custom_call.1} parent=1 // pred_fallthru
      _
    // Predicated region
    $region42: #{tpu_custom_call.1} parent=1 // pred_check
      _
    $region43: #{tpu_custom_call.1} parent=1 // pred_check_branch
      %93 = sbr.rel (0) target = $region45
    $region44: #{tpu_custom_call.1} parent=1 // pred_region
      %94 = dma.done [#allocation6], 2048
    $region45: #{tpu_custom_call.1} parent=1 // pred_fallthru
      _
    // Predicated region
    $region46: #{tpu_custom_call.1} parent=1 // pred_check
      _
    $region47: #{tpu_custom_call.1} parent=1 // pred_check_branch
      %96 = sbr.rel (0) target = $region49
    $region48: #{tpu_custom_call.1} parent=1 // pred_region
      %97 = dma.done [#allocation6], 2048
    $region49: #{tpu_custom_call.1} parent=1 // pred_fallthru
      _
    // Predicated region
    $region50: #{tpu_custom_call.1} parent=1 // pred_check
      _
    $region51: #{tpu_custom_call.1} parent=1 // pred_check_branch
      %99 = sbr.rel (0) target = $region53
    $region52: #{tpu_custom_call.1} parent=1 // pred_region
      %100 = dma.done [#allocation9], 1024
    $region53: #{tpu_custom_call.1} parent=1 // pred_fallthru
      _
    // Predicated region
    $region54: #{tpu_custom_call.1} parent=1 // pred_check
      _
    $region55: #{tpu_custom_call.1} parent=1 // pred_check_branch
      %102 = sbr.rel (0) target = $region57
    $region56: #{tpu_custom_call.1} parent=1 // pred_region
      %103 = dma.done [#allocation9], 1024
    $region57: #{tpu_custom_call.1} parent=1 // pred_fallthru
      _
    %v105 = vld [vmem:[#allocation2] sm:$0xff]
    %v106 = vld [vmem:[#allocation2 + $0x8] sm:$0xff]
    %v107 = vld [vmem:[%s0] sm:$0xf]
    %v108 = vld [vmem:[%s0 + $0x4] sm:$0xf]
    %v109 = vpack.c.bf16 %v106, %v105
    %v110 = vld [vmem:[#allocation5] sm:$0xff]
    %v111 = vld [vmem:[#allocation5 + $0x8] sm:$0xff]
    %v112 = vld [vmem:[#allocation5 + $0x10] sm:$0xff]
    %v113 = vld [vmem:[#allocation5 + $0x18] sm:$0xff]
    %v114 = vld [vmem:[#allocation5 + $0x20] sm:$0xff]
    %v115 = vld [vmem:[#allocation5 + $0x28] sm:$0xff]
    %v116 = vld [vmem:[#allocation5 + $0x30] sm:$0xff]
    %v117 = vld [vmem:[#allocation5 + $0x38] sm:$0xff]
    %v118 = vld [vmem:[#allocation5 + $0x40] sm:$0xff]
    %v119 = vld [vmem:[#allocation5 + $0x48] sm:$0xff]
    %v120 = vld [vmem:[#allocation5 + $0x50] sm:$0xff]
    %v121 = vld [vmem:[#allocation5 + $0x58] sm:$0xff]
    %v122 = vld [vmem:[#allocation5 + $0x60] sm:$0xff]
    %v123 = vld [vmem:[#allocation5 + $0x68] sm:$0xff]
    %v124 = vld [vmem:[#allocation5 + $0x70] sm:$0xff]
    %v125 = vld [vmem:[#allocation5 + $0x78] sm:$0xff]
    %v126 = vld [vmem:[#allocation7] sm:$0xff]
    %v127 = vld [vmem:[#allocation7 + $0x8] sm:$0xff]
    %v128 = vld [vmem:[#allocation7 + $0x10] sm:$0xff]
    %v129 = vld [vmem:[#allocation7 + $0x18] sm:$0xff]
    %v130 = vld [vmem:[#allocation7 + $0x20] sm:$0xff]
    %v131 = vld [vmem:[#allocation7 + $0x28] sm:$0xff]
    %v132 = vld [vmem:[#allocation7 + $0x30] sm:$0xff]
    %v133 = vld [vmem:[#allocation7 + $0x38] sm:$0xff]
    %v134 = vld [vmem:[#allocation7 + $0x40] sm:$0xff]
    %v135 = vld [vmem:[#allocation7 + $0x48] sm:$0xff]
    %v136 = vld [vmem:[#allocation7 + $0x50] sm:$0xff]
    %v137 = vld [vmem:[#allocation7 + $0x58] sm:$0xff]
    %v138 = vld [vmem:[#allocation7 + $0x60] sm:$0xff]
    %v139 = vld [vmem:[#allocation7 + $0x68] sm:$0xff]
    %v140 = vld [vmem:[#allocation7 + $0x70] sm:$0xff]
    %v141 = vld [vmem:[#allocation7 + $0x78] sm:$0xff]
    %v158 = vunpack.c.l.b16 %v126
    %v159 = vunpack.c.h.b16 %v126
    %v160 = vunpack.c.l.b16 %v127
    %v161 = vunpack.c.h.b16 %v127
    %v162 = vunpack.c.l.b16 %v128
    %v163 = vunpack.c.h.b16 %v128
    %v164 = vunpack.c.l.b16 %v129
    %v165 = vunpack.c.h.b16 %v129
    %v166 = vunpack.c.l.b16 %v130
    %v167 = vunpack.c.h.b16 %v130
    %v168 = vunpack.c.l.b16 %v131
    %v169 = vunpack.c.h.b16 %v131
    %v170 = vunpack.c.l.b16 %v132
    %v171 = vunpack.c.h.b16 %v132
    %v172 = vunpack.c.l.b16 %v133
    %v173 = vunpack.c.h.b16 %v133
    %v174 = vunpack.c.l.b16 %v134
    %v175 = vunpack.c.h.b16 %v134
    %v176 = vunpack.c.l.b16 %v135
    %v177 = vunpack.c.h.b16 %v135
    %v178 = vunpack.c.l.b16 %v136
    %v179 = vunpack.c.h.b16 %v136
    %v180 = vunpack.c.l.b16 %v137
    %v181 = vunpack.c.h.b16 %v137
    %v182 = vunpack.c.l.b16 %v138
    %v183 = vunpack.c.h.b16 %v138
    %v184 = vunpack.c.l.b16 %v139
    %v185 = vunpack.c.h.b16 %v139
    %v186 = vunpack.c.l.b16 %v140
    %v187 = vunpack.c.h.b16 %v140
    %v188 = vunpack.c.l.b16 %v141
    %v189 = vunpack.c.h.b16 %v141
    %v190 = vpack.c.b16 %v160, %v158
    %v191 = vpack.c.b16 %v161, %v159
    %v192 = vpack.c.b16 %v164, %v162
    %v193 = vpack.c.b16 %v165, %v163
    %v194 = vpack.c.b16 %v168, %v166
    %v195 = vpack.c.b16 %v169, %v167
    %v196 = vpack.c.b16 %v172, %v170
    %v197 = vpack.c.b16 %v173, %v171
    %v198 = vpack.c.b16 %v176, %v174
    %v199 = vpack.c.b16 %v177, %v175
    %v200 = vpack.c.b16 %v180, %v178
    %v201 = vpack.c.b16 %v181, %v179
    %v202 = vpack.c.b16 %v184, %v182
    %v203 = vpack.c.b16 %v185, %v183
    %v204 = vpack.c.b16 %v188, %v186
    %v205 = vpack.c.b16 %v189, %v187
    %222 = vmatprep.subr.bf16.mxu0 %v191
    %223 = vmatpush1.bf16.msra.mxu0 %v190
    %224 = vmatprep.subr.bf16.mxu0 %v193
    %225 = vmatpush1.bf16.msra.mxu0 %v192
    %226 = vmatprep.subr.bf16.mxu0 %v195
    %227 = vmatpush1.bf16.msra.mxu0 %v194
    %228 = vmatprep.subr.bf16.mxu0 %v197
    %229 = vmatpush1.bf16.msra.mxu0 %v196
    %230 = vmatprep.subr.bf16.mxu0 %v199
    %231 = vmatpush1.bf16.msra.mxu0 %v198
    %232 = vmatprep.subr.bf16.mxu0 %v201
    %233 = vmatpush1.bf16.msra.mxu0 %v200
    %234 = vmatprep.subr.bf16.mxu0 %v203
    %235 = vmatpush1.bf16.msra.mxu0 %v202
    %236 = vmatprep.subr.bf16.mxu0 %v205
    %237 = vmatpush1.bf16.msra.mxu0 %v204
    %238 = vmatprep.subr.bf16.mxu0 0
    %239 = vmatpush1.bf16.msra.mxu0 0
    %240 = vmatprep.subr.bf16.mxu0 0
    %241 = vmatpush1.bf16.msra.mxu0 0
    %242 = vmatprep.subr.bf16.mxu0 0
    %243 = vmatpush1.bf16.msra.mxu0 0
    %244 = vmatprep.subr.bf16.mxu0 0
    %245 = vmatpush1.bf16.msra.mxu0 0
    %246 = vmatprep.subr.bf16.mxu0 0
    %247 = vmatpush1.bf16.msra.mxu0 0
    %248 = vmatprep.subr.bf16.mxu0 0
    %249 = vmatpush1.bf16.msra.mxu0 0
    %250 = vmatprep.subr.bf16.mxu0 0
    %251 = vmatpush1.bf16.msra.mxu0 0
    %252 = vmatprep.subr.bf16.mxu0 0
    %253 = vmatpush1.bf16.msra.mxu0 0
    %254 = vmatprep.mubr.bf16.mxu0 0
    %255 = vmatmul.mubr.bf16.gmra.mrb[0].mxu0 %v109
    %v256 = vpop.f32.mrb[0].mxu0
    %v257 = vadd.f32 0.0, %v256
    %v258 = vpop.f32.mrb[0].mxu0
    %v259 = vadd.f32 0.0, %v258
    %v260 = vpop.f32.mrb[0].mxu0
    %v261 = vadd.f32 0.0, %v260
    %v262 = vpop.f32.mrb[0].mxu0
    %v263 = vadd.f32 0.0, %v262
    %264 = vdwg.mxu0
    %v267 = vunpack.c.l.b16 %v107
    %v268 = vunpack.c.l.b16 %v108
    %v269 = vpack.c.b16 %v268, %v267
    %v287 = vunpack.c.l.b16 %v110
    %v288 = vunpack.c.h.b16 %v110
    %v289 = vunpack.c.l.b16 %v111
    %v290 = vunpack.c.h.b16 %v111
    %v291 = vunpack.c.l.b16 %v112
    %v292 = vunpack.c.h.b16 %v112
    %v293 = vunpack.c.l.b16 %v113
    %v294 = vunpack.c.h.b16 %v113
    %v295 = vunpack.c.l.b16 %v114
    %v296 = vunpack.c.h.b16 %v114
    %v297 = vunpack.c.l.b16 %v115
    %v298 = vunpack.c.h.b16 %v115
    %v299 = vunpack.c.l.b16 %v116
    %v300 = vunpack.c.h.b16 %v116
    %v301 = vunpack.c.l.b16 %v117
    %v302 = vunpack.c.h.b16 %v117
    %v303 = vunpack.c.l.b16 %v118
    %v304 = vunpack.c.h.b16 %v118
    %v305 = vunpack.c.l.b16 %v119
    %v306 = vunpack.c.h.b16 %v119
    %v307 = vunpack.c.l.b16 %v120
    %v308 = vunpack.c.h.b16 %v120
    %v309 = vunpack.c.l.b16 %v121
    %v310 = vunpack.c.h.b16 %v121
    %v311 = vunpack.c.l.b16 %v122
    %v312 = vunpack.c.h.b16 %v122
    %v313 = vunpack.c.l.b16 %v123
    %v314 = vunpack.c.h.b16 %v123
    %v315 = vunpack.c.l.b16 %v124
    %v316 = vunpack.c.h.b16 %v124
    %v317 = vunpack.c.l.b16 %v125
    %v318 = vunpack.c.h.b16 %v125
    %v319 = vpack.c.b16 %v289, %v287
    %v320 = vpack.c.b16 %v290, %v288
    %v321 = vpack.c.b16 %v293, %v291
    %v322 = vpack.c.b16 %v294, %v292
    %v323 = vpack.c.b16 %v297, %v295
    %v324 = vpack.c.b16 %v298, %v296
    %v325 = vpack.c.b16 %v301, %v299
    %v326 = vpack.c.b16 %v302, %v300
    %v327 = vpack.c.b16 %v305, %v303
    %v328 = vpack.c.b16 %v306, %v304
    %v329 = vpack.c.b16 %v309, %v307
    %v330 = vpack.c.b16 %v310, %v308
    %v331 = vpack.c.b16 %v313, %v311
    %v332 = vpack.c.b16 %v314, %v312
    %v333 = vpack.c.b16 %v317, %v315
    %v334 = vpack.c.b16 %v318, %v316
    %351 = vmatprep.subr.bf16.mxu0 %v320
    %352 = vmatpush1.bf16.msra.mxu0 %v319
    %353 = vmatprep.subr.bf16.mxu0 %v322
    %354 = vmatpush1.bf16.msra.mxu0 %v321
    %355 = vmatprep.subr.bf16.mxu0 %v324
    %356 = vmatpush1.bf16.msra.mxu0 %v323
    %357 = vmatprep.subr.bf16.mxu0 %v326
    %358 = vmatpush1.bf16.msra.mxu0 %v325
    %359 = vmatprep.subr.bf16.mxu0 %v328
    %360 = vmatpush1.bf16.msra.mxu0 %v327
    %361 = vmatprep.subr.bf16.mxu0 %v330
    %362 = vmatpush1.bf16.msra.mxu0 %v329
    %363 = vmatprep.subr.bf16.mxu0 %v332
    %364 = vmatpush1.bf16.msra.mxu0 %v331
    %365 = vmatprep.subr.bf16.mxu0 %v334
    %366 = vmatpush1.bf16.msra.mxu0 %v333
    %367 = vmatprep.subr.bf16.mxu0 0
    %368 = vmatpush1.bf16.msra.mxu0 0
    %369 = vmatprep.subr.bf16.mxu0 0
    %370 = vmatpush1.bf16.msra.mxu0 0
    %371 = vmatprep.subr.bf16.mxu0 0
    %372 = vmatpush1.bf16.msra.mxu0 0
    %373 = vmatprep.subr.bf16.mxu0 0
    %374 = vmatpush1.bf16.msra.mxu0 0
    %375 = vmatprep.subr.bf16.mxu0 0
    %376 = vmatpush1.bf16.msra.mxu0 0
    %377 = vmatprep.subr.bf16.mxu0 0
    %378 = vmatpush1.bf16.msra.mxu0 0
    %379 = vmatprep.subr.bf16.mxu0 0
    %380 = vmatpush1.bf16.msra.mxu0 0
    %381 = vmatprep.subr.bf16.mxu0 0
    %382 = vmatpush1.bf16.msra.mxu0 0
    %383 = vmatprep.mubr.bf16.mxu0 0
    %384 = vmatmul.mubr.bf16.gmra.mrb[0].mxu0 %v269
    %v385 = vpop.f32.mrb[0].mxu0
    %v386 = vadd.f32 %v257, %v385
    %v387 = vpop.f32.mrb[0].mxu0
    %v388 = vadd.f32 %v259, %v387
    %v389 = vpop.f32.mrb[0].mxu0
    %v390 = vadd.f32 %v261, %v389
    %v391 = vpop.f32.mrb[0].mxu0
    %v392 = vadd.f32 %v263, %v391
    %393 = vdwg.mxu0
    %v394 = vld [vmem:[%s4] sm:$0x3]
    %v396 = vlaneseq
    %v397 = vshrl.u32 %v396, 7
    %v398 = vsub.s32 0, %v397
    %v399 = vrot.slane %v394, %v398
    %v400 = vlaneseq
    %v401 = vshrl.u32 %v400, 7
    %v402 = vsub.s32 1, %v401
    %v403 = vrot.slane %v394, %v402
    %v406 = vadd.f32 %v386, %v399
    %v407 = vadd.f32 %v388, %v403
    %v408 = vadd.f32 %v390, %v399
    %v409 = vadd.f32 %v392, %v403
    %v410 = vxor.u32 %v406, 2147483648
    %v411 = vxor.u32 %v408, 2147483648
    %v412 = vmul.f32 %v410, 1.442695
    %v413 = vpow.pop %v412
    %v414 = vmul.f32 %v411, 1.442695
    %v415 = vpow.pop %v414
    %v416 = vadd.f32 %v413, 1.0
    %v417 = vadd.f32 %v415, 1.0
    %v418 = vrcp.pop %v416
    %v419 = vmul.f32 1.0, %v418
    %v420 = vrcp.pop %v417
    %v421 = vmul.f32 1.0, %v420
    %v422 = vxor.u32 %v407, 2147483648
    %v423 = vxor.u32 %v409, 2147483648
    %v424 = vmul.f32 %v422, 1.442695
    %v425 = vpow.pop %v424
    %v426 = vmul.f32 %v423, 1.442695
    %v427 = vpow.pop %v426
    %v428 = vadd.f32 %v425, 1.0
    %v429 = vadd.f32 %v427, 1.0
    %v430 = vrcp.pop %v428
    %v431 = vmul.f32 1.0, %v430
    %v432 = vrcp.pop %v429
    %v433 = vmul.f32 1.0, %v432
    %v434 = vld [vmem:[#allocation8] sm:$0xf]
    %v435 = vld [vmem:[#allocation8 + $0x4] sm:$0xf]
    %v436 = vld [vmem:[#allocation8 + $0x8] sm:$0xf]
    %v437 = vld [vmem:[#allocation8 + $0xc] sm:$0xf]
    %v438 = vld [vmem:[#allocation8 + $0x10] sm:$0xf]
    %v439 = vld [vmem:[#allocation8 + $0x14] sm:$0xf]
    %v440 = vld [vmem:[#allocation8 + $0x18] sm:$0xf]
    %v441 = vld [vmem:[#allocation8 + $0x1c] sm:$0xf]
    %v442 = vld [vmem:[#allocation8 + $0x20] sm:$0xf]
    %v443 = vld [vmem:[#allocation8 + $0x24] sm:$0xf]
    %v444 = vld [vmem:[#allocation8 + $0x28] sm:$0xf]
    %v445 = vld [vmem:[#allocation8 + $0x2c] sm:$0xf]
    %v446 = vld [vmem:[#allocation8 + $0x30] sm:$0xf]
    %v447 = vld [vmem:[#allocation8 + $0x34] sm:$0xf]
    %v448 = vld [vmem:[#allocation8 + $0x38] sm:$0xf]
    %v449 = vld [vmem:[#allocation8 + $0x3c] sm:$0xf]
    %v450 = vld [vmem:[%s7] sm:$0x1]
    %v452 = vlaneseq
    %v453 = vshrl.u32 %v452, 7
    %v454 = vsub.s32 0, %v453
    %v455 = vrot.slane %v450, %v454
    %v473 = vunpack.c.l.b16 %v434
    %v474 = vunpack.c.l.b16 %v435
    %v475 = vunpack.c.l.b16 %v436
    %v476 = vunpack.c.l.b16 %v437
    %v477 = vunpack.c.l.b16 %v438
    %v478 = vunpack.c.l.b16 %v439
    %v479 = vunpack.c.l.b16 %v440
    %v480 = vunpack.c.l.b16 %v441
    %v481 = vunpack.c.l.b16 %v442
    %v482 = vunpack.c.l.b16 %v443
    %v483 = vunpack.c.l.b16 %v444
    %v484 = vunpack.c.l.b16 %v445
    %v485 = vunpack.c.l.b16 %v446
    %v486 = vunpack.c.l.b16 %v447
    %v487 = vunpack.c.l.b16 %v448
    %v488 = vunpack.c.l.b16 %v449
    %v489 = vpack.c.b16 %v474, %v473
    %v490 = vpack.c.b16 %v476, %v475
    %v491 = vpack.c.b16 %v478, %v477
    %v492 = vpack.c.b16 %v480, %v479
    %v493 = vpack.c.b16 %v482, %v481
    %v494 = vpack.c.b16 %v484, %v483
    %v495 = vpack.c.b16 %v486, %v485
    %v496 = vpack.c.b16 %v488, %v487
    %505 = vmatprep.subr.bf16.mxu0 0
    %506 = vmatpush1.bf16.msra.mxu0 %v489
    %507 = vmatprep.subr.bf16.mxu0 0
    %508 = vmatpush1.bf16.msra.mxu0 %v490
    %509 = vmatprep.subr.bf16.mxu0 0
    %510 = vmatpush1.bf16.msra.mxu0 %v491
    %511 = vmatprep.subr.bf16.mxu0 0
    %512 = vmatpush1.bf16.msra.mxu0 %v492
    %513 = vmatprep.subr.bf16.mxu0 0
    %514 = vmatpush1.bf16.msra.mxu0 %v493
    %515 = vmatprep.subr.bf16.mxu0 0
    %516 = vmatpush1.bf16.msra.mxu0 %v494
    %517 = vmatprep.subr.bf16.mxu0 0
    %518 = vmatpush1.bf16.msra.mxu0 %v495
    %519 = vmatprep.subr.bf16.mxu0 0
    %520 = vmatpush1.bf16.msra.mxu0 %v496
    %521 = vmatprep.subr.bf16.mxu0 0
    %522 = vmatpush1.bf16.msra.mxu0 0
    %523 = vmatprep.subr.bf16.mxu0 0
    %524 = vmatpush1.bf16.msra.mxu0 0
    %525 = vmatprep.subr.bf16.mxu0 0
    %526 = vmatpush1.bf16.msra.mxu0 0
    %527 = vmatprep.subr.bf16.mxu0 0
    %528 = vmatpush1.bf16.msra.mxu0 0
    %529 = vmatprep.subr.bf16.mxu0 0
    %530 = vmatpush1.bf16.msra.mxu0 0
    %531 = vmatprep.subr.bf16.mxu0 0
    %532 = vmatpush1.bf16.msra.mxu0 0
    %533 = vmatprep.subr.bf16.mxu0 0
    %534 = vmatpush1.bf16.msra.mxu0 0
    %535 = vmatprep.subr.bf16.mxu0 0
    %536 = vmatpush1.bf16.msra.mxu0 0
    %537 = vmatprep.mubr.bf16.mxu0 0
    %538 = vmatmul.mubr.bf16.gmra.mrb[0].mxu0 %v269
    %v539 = vpop.f32.mrb[0].mxu0
    %v540 = vadd.f32 %v455, %v539
    %v541 = vpop.f32.mrb[0].mxu0
    %v542 = vpop.f32.mrb[0].mxu0
    %v543 = vadd.f32 %v455, %v542
    %v544 = vpop.f32.mrb[0].mxu0
    %545 = vdwg.mxu0
    %v546 = vld [vmem:[#allocation10] sm:$0xf]
    %v547 = vld [vmem:[#allocation10 + $0x4] sm:$0xf]
    %v548 = vld [vmem:[#allocation10 + $0x8] sm:$0xf]
    %v549 = vld [vmem:[#allocation10 + $0xc] sm:$0xf]
    %v550 = vld [vmem:[#allocation10 + $0x10] sm:$0xf]
    %v551 = vld [vmem:[#allocation10 + $0x14] sm:$0xf]
    %v552 = vld [vmem:[#allocation10 + $0x18] sm:$0xf]
    %v553 = vld [vmem:[#allocation10 + $0x1c] sm:$0xf]
    %v554 = vld [vmem:[#allocation10 + $0x20] sm:$0xf]
    %v555 = vld [vmem:[#allocation10 + $0x24] sm:$0xf]
    %v556 = vld [vmem:[#allocation10 + $0x28] sm:$0xf]
    %v557 = vld [vmem:[#allocation10 + $0x2c] sm:$0xf]
    %v558 = vld [vmem:[#allocation10 + $0x30] sm:$0xf]
    %v559 = vld [vmem:[#allocation10 + $0x34] sm:$0xf]
    %v560 = vld [vmem:[#allocation10 + $0x38] sm:$0xf]
    %v561 = vld [vmem:[#allocation10 + $0x3c] sm:$0xf]
    %v562 = vld [vmem:[%s8] sm:$0x1]
    %v564 = vlaneseq
    %v565 = vshrl.u32 %v564, 7
    %v566 = vsub.s32 0, %v565
    %v567 = vrot.slane %v562, %v566
    %v585 = vunpack.c.l.b16 %v546
    %v586 = vunpack.c.l.b16 %v547
    %v587 = vunpack.c.l.b16 %v548
    %v588 = vunpack.c.l.b16 %v549
    %v589 = vunpack.c.l.b16 %v550
    %v590 = vunpack.c.l.b16 %v551
    %v591 = vunpack.c.l.b16 %v552
    %v592 = vunpack.c.l.b16 %v553
    %v593 = vunpack.c.l.b16 %v554
    %v594 = vunpack.c.l.b16 %v555
    %v595 = vunpack.c.l.b16 %v556
    %v596 = vunpack.c.l.b16 %v557
    %v597 = vunpack.c.l.b16 %v558
    %v598 = vunpack.c.l.b16 %v559
    %v599 = vunpack.c.l.b16 %v560
    %v600 = vunpack.c.l.b16 %v561
    %v601 = vpack.c.b16 %v586, %v585
    %v602 = vpack.c.b16 %v588, %v587
    %v603 = vpack.c.b16 %v590, %v589
    %v604 = vpack.c.b16 %v592, %v591
    %v605 = vpack.c.b16 %v594, %v593
    %v606 = vpack.c.b16 %v596, %v595
    %v607 = vpack.c.b16 %v598, %v597
    %v608 = vpack.c.b16 %v600, %v599
    %617 = vmatprep.subr.bf16.mxu0 0
    %618 = vmatpush1.bf16.msra.mxu0 %v601
    %619 = vmatprep.subr.bf16.mxu0 0
    %620 = vmatpush1.bf16.msra.mxu0 %v602
    %621 = vmatprep.subr.bf16.mxu0 0
    %622 = vmatpush1.bf16.msra.mxu0 %v603
    %623 = vmatprep.subr.bf16.mxu0 0
    %624 = vmatpush1.bf16.msra.mxu0 %v604
    %625 = vmatprep.subr.bf16.mxu0 0
    %626 = vmatpush1.bf16.msra.mxu0 %v605
    %627 = vmatprep.subr.bf16.mxu0 0
    %628 = vmatpush1.bf16.msra.mxu0 %v606
    %629 = vmatprep.subr.bf16.mxu0 0
    %630 = vmatpush1.bf16.msra.mxu0 %v607
    %631 = vmatprep.subr.bf16.mxu0 0
    %632 = vmatpush1.bf16.msra.mxu0 %v608
    %633 = vmatprep.subr.bf16.mxu0 0
    %634 = vmatpush1.bf16.msra.mxu0 0
    %635 = vmatprep.subr.bf16.mxu0 0
    %636 = vmatpush1.bf16.msra.mxu0 0
    %637 = vmatprep.subr.bf16.mxu0 0
    %638 = vmatpush1.bf16.msra.mxu0 0
    %639 = vmatprep.subr.bf16.mxu0 0
    %640 = vmatpush1.bf16.msra.mxu0 0
    %641 = vmatprep.subr.bf16.mxu0 0
    %642 = vmatpush1.bf16.msra.mxu0 0
    %643 = vmatprep.subr.bf16.mxu0 0
    %644 = vmatpush1.bf16.msra.mxu0 0
    %645 = vmatprep.subr.bf16.mxu0 0
    %646 = vmatpush1.bf16.msra.mxu0 0
    %647 = vmatprep.subr.bf16.mxu0 0
    %648 = vmatpush1.bf16.msra.mxu0 0
    %649 = vmatprep.mubr.bf16.mxu0 0
    %650 = vmatmul.mubr.bf16.gmra.mrb[0].mxu0 %v109
    %v651 = vpop.f32.mrb[0].mxu0
    %v652 = vadd.f32 %v567, %v651
    %v653 = vpop.f32.mrb[0].mxu0
    %v654 = vpop.f32.mrb[0].mxu0
    %v655 = vadd.f32 %v567, %v654
    %v656 = vpop.f32.mrb[0].mxu0
    %657 = vdwg.mxu0
    %v658 = vmul.f32 %v419, %v652
    %v659 = vmul.f32 %v421, %v655
    %v660 = vadd.f32 %v540, %v658
    %v661 = vadd.f32 %v543, %v659
    %v662 = vtanh.pop %v660
    %v663 = vtanh.pop %v661
    %v664 = vsub.f32 1.0, %v431
    %v665 = vsub.f32 1.0, %v433
    %v666 = vmul.f32 %v664, %v662
    %v667 = vmul.f32 %v665, %v663
    %v668 = vmul.f32 %v431, %v105
    %v669 = vmul.f32 %v433, %v106
    %v670 = vadd.f32 %v666, %v668
    %v671 = vadd.f32 %v667, %v669
    %672 = vst [vmem:[#allocation11] sm:$0xff] %v670
    %673 = vst [vmem:[#allocation11 + $0x8] sm:$0xff] %v671
    %v674 = vpack.c.bf16 %v671, %v670
    %v676 = vunpack.c.l.b16 %v674
    %v677 = vunpack.c.h.b16 %v674
    %v678 = vpack.c.b16 %v676, %v676
    %v679 = vpack.c.b16 %v677, %v677
    %682 = vst [vmem:[#allocation12] sm:$0xf] %v678
    %683 = vst [vmem:[#allocation12 + $0x4] sm:$0xf] %v679
    // Predicated region
    $region58: #{tpu_custom_call.1} parent=1 // pred_check
      _
    $region59: #{tpu_custom_call.1} parent=1 // pred_check_branch
      %685 = sbr.rel (0) target = $region61
    $region60: #{tpu_custom_call.1} parent=1 // pred_region
      %s687 = ssub.s32 256, 256
      %688 = vsyncadd [#allocation4], %s687
      %s689 = sshll.u32 [#allocation11], 4
      %s690 = int_to_ptr.vmem [resolvable:$true] %s689
      %695 = dma.vmem_to_hbm [thread:$0]  %s690, 256, %s9, [#allocation4], 128, 128, 8
    $region61: #{tpu_custom_call.1} parent=1 // pred_fallthru
      _
    // Predicated region
    $region62: #{tpu_custom_call.1} parent=1 // pred_check
      _
    $region63: #{tpu_custom_call.1} parent=1 // pred_check_branch
      %697 = sbr.rel (0) target = $region65
    $region64: #{tpu_custom_call.1} parent=1 // pred_region
      %s699 = ssub.s32 128, 128
      %700 = vsyncadd [#allocation13], %s699
      %s701 = sshll.u32 [#allocation12], 4
      %s702 = int_to_ptr.vmem [resolvable:$true] %s701
      %707 = dma.vmem_to_hbm [thread:$0]  %s702, 128, %s10, [#allocation13], 64, 64, 4
    $region65: #{tpu_custom_call.1} parent=1 // pred_fallthru
      _
    // Predicated region
    $region66: #{tpu_custom_call.1} parent=1 // pred_check
      _
    $region67: #{tpu_custom_call.1} parent=1 // pred_check_branch
      %709 = sbr.rel (0) target = $region69
    $region68: #{tpu_custom_call.1} parent=1 // pred_region
      %710 = dma.done [#allocation4], 256
    $region69: #{tpu_custom_call.1} parent=1 // pred_fallthru
      _
    // Predicated region
    $region70: #{tpu_custom_call.1} parent=1 // pred_check
      _
    $region71: #{tpu_custom_call.1} parent=1 // pred_check_branch
      %712 = sbr.rel (0) target = $region73
    $region72: #{tpu_custom_call.1} parent=1 // pred_region
      %713 = dma.done [#allocation13], 128
    $region73: #{tpu_custom_call.1} parent=1 // pred_fallthru
      _
    %714 = vsyncpa [#allocation3], 1
    %715 = vsyncpa [#allocation6], 1
    %716 = vsyncpa [#allocation9], 1
    %717 = vsyncpa [#allocation4], 1
    %718 = vsyncpa [#allocation13], 1

</llo_original>
